<compile_context>
chip_gen: v5e
topology: v5e:2x2
jax: 0.10.0
libtpu: 0.0.40
codegen_flags: <defaults>
</compile_context>

<pallas_src>
import jax
import jax.numpy as jnp
import numpy as np
from jax.experimental import pallas as pl
from jax.experimental.pallas import tpu as pltpu

EOS_TOKEN_ID = 2
PAD_TOKEN_ID = 0


def _round_up(x, m):
    return ((x + m - 1) // m) * m


# ----------------------------------------------------------------------------
# Kernel: gather hidden_states[row_src[g], pos_src[g], :] for the BB rows of
# this grid step into a (BB, H) output block.  The source indices come from
# scalar-prefetched SMEM arrays; the gather is a ring of manual row DMAs from
# HBM (pl.ANY) into a VMEM scratch slab, keeping N_SEM copies in flight.
# ----------------------------------------------------------------------------
def _make_eos_gather_kernel(bb, n_sem):
    assert n_sem & (n_sem - 1) == 0, "n_sem must be a power of two"

    def kernel(row_ref, pos_ref, hid_hbm, out_ref, buf, sem):
        # row_ref, pos_ref : (B_pad,) int32 in SMEM (scalar prefetch)
        # hid_hbm          : (B, S, H) raw HBM ref (memory_space=pl.ANY)
        # out_ref          : (bb, H) VMEM output block
        # buf              : (bb, H) VMEM scratch (DMA landing pad)
        # sem              : (n_sem,) DMA semaphores
        base = pl.program_id(0) * bb

        def dma(r, slot):
            g = base + r
            return pltpu.make_async_copy(
                hid_hbm.at[row_ref[g], pos_ref[g]],  # (H,) row in HBM
                buf.at[r],                           # (H,) row in VMEM slab
                sem.at[slot],
            )

        # Issue one row DMA per r; before reusing a semaphore slot, wait for
        # the copy issued n_sem iterations earlier (ring of n_sem in flight).
        @pl.loop(0, bb)
        def _(r):
            slot = r & (n_sem - 1)

            @pl.when(r >= n_sem)
            def _():
                dma(r - n_sem, slot).wait()

            dma(r, slot).start()

        # Drain the last min(n_sem, bb) in-flight copies.
        tail = min(n_sem, bb)

        @pl.loop(bb - tail, bb)
        def _(r):
            dma(r, r & (n_sem - 1)).wait()

        # Dense whole-block store into the pipelined output buffer.
        out_ref[...] = buf[...]

    return kernel


def eos_gather(hidden_states, last_eos, *, rows_per_step=64, n_sem=8):
    """Gather hidden_states[b, last_eos[b], :] for every sequence b -> (B, H)."""
    B, S, H = hidden_states.shape
    dtype = hidden_states.dtype
    itemsize = jnp.dtype(dtype).itemsize

    # Sublane-dense row granularity (16 for packed sub-32-bit dtypes, else 8).
    row_align = 16 if itemsize < 4 else 8
    b_dense = _round_up(B, row_align)

    bb = _round_up(min(rows_per_step, b_dense), row_align)
    # v7x megacore: keep >= 2 grid steps when there are enough rows.
    if b_dense // bb < 2 and b_dense >= 2 * row_align:
        bb = _round_up(-(-b_dense // 2), row_align)
    b_pad = _round_up(b_dense, bb)
    grid = (b_pad // bb,)

    # Padded, clamped source indices (tiny int32 work, plain JAX).
    row_src = jnp.clip(jnp.arange(b_pad, dtype=jnp.int32), 0, B - 1)
    pos_src = jnp.clip(last_eos.astype(jnp.int32), 0, S - 1)[row_src]

    kernel = _make_eos_gather_kernel(bb, n_sem)

    out_padded = pl.pallas_call(
        kernel,
        out_shape=jax.ShapeDtypeStruct((b_pad, H), dtype),
        grid_spec=pltpu.PrefetchScalarGridSpec(
            num_scalar_prefetch=2,
            grid=grid,
            in_specs=[pl.BlockSpec(memory_space=pl.ANY)],  # raw HBM, manual DMA
            out_specs=pl.BlockSpec((bb, H), lambda i, row_ref, pos_ref: (i, 0)),
            scratch_shapes=[
                pltpu.VMEM((bb, H), dtype),
                pltpu.SemaphoreType.DMA((n_sem,)),
            ],
        ),
        compiler_params=pltpu.CompilerParams(
            dimension_semantics=("parallel",),  # megacore sharding on v7x
        ),
        cost_estimate=pl.CostEstimate(
            flops=0,
            transcendentals=0,
            bytes_accessed=2 * b_pad * H * itemsize,
        ),
    )(row_src, pos_src, hidden_states)

    return out_padded[:B]


# ----------------------------------------------------------------------------
# Module wrapper (glue in plain JAX), mirroring CodeT5_sub.forward.
# ----------------------------------------------------------------------------
def codet5_sub_forward(input_ids, hidden_states, block_size, labels=None,
                       *, validate_eos=False):
    """Post-encoder part of CodeT5_sub.forward.

    input_ids:     (..., block_size-multiple) int32, viewed to (B, block_size)
    hidden_states: (B, block_size, H) -- stand-in for
                   encoder(...)['decoder_hidden_states'][-1]
    Returns pooled hidden states of shape (B, H).
    """
    # input_ids.view(-1, block_size)
    input_ids = input_ids.reshape(-1, block_size)
    B, S = input_ids.shape

    # attention_mask is only consumed by the (stubbed) encoder.
    _attention_mask = input_ids != PAD_TOKEN_ID  # noqa: F841
    del labels  # only forwarded to the (stubbed) encoder in the reference

    if validate_eos:
        # Debug-only host check (forces a device->host sync; keep off hot path).
        counts = np.asarray(jnp.sum(input_ids == EOS_TOKEN_ID, axis=1))
        if len(np.unique(counts)) > 1:
            raise ValueError("All examples must have the same number of <eos> tokens.")

    # Last <eos> position per row -- tiny (B, S) int32 work, stays in plain JAX.
    eos = input_ids == EOS_TOKEN_ID
    pos = jax.lax.broadcasted_iota(jnp.int32, (B, S), 1)
    last_eos = jnp.max(jnp.where(eos, pos, -1), axis=1)
    # Rows without any <eos> are clamped to position 0 (documented deviation:
    # the PyTorch reference would misalign/error); keeps the gather in bounds.
    last_eos = jnp.clip(last_eos, 0, S - 1).astype(jnp.int32)

    # Pallas gather: (B, H) = hidden_states[b, last_eos[b], :]
    return eos_gather(hidden_states, last_eos)


if __name__ == "__main__":
    # Small, deterministic example shapes (H is lane-dense = 128 so the demo
    # exercises the real unmasked-store layout).
    block_size = 8      # S
    hidden_size = 128   # H
    num_pairs = 2
    B = 2 * num_pairs   # 4 sequences

    key = jax.random.PRNGKey(0)
    k_ids, k_hid = jax.random.split(key)

    # Build input_ids on host (writable numpy copy): each sequence has random
    # tokens, exactly one <eos>, then pads.
    ids = np.array(
        jax.random.randint(k_ids, (B, block_size), 3, 100, dtype=jnp.int32),
        dtype=np.int32,
    )
    lengths = [6, 8, 5, 7]
    for b in range(B):
        L = lengths[b]
        ids[b, L - 1] = EOS_TOKEN_ID
        ids[b, L:] = PAD_TOKEN_ID
    # The dataloader feeds pairs: shape (num_pairs, 2*block_size); forward views it back.
    input_ids = jnp.asarray(ids, dtype=jnp.int32).reshape(num_pairs, 2 * block_size)

    # TODO(synk): synthesized stand-in for encoder(...)['decoder_hidden_states'][-1]
    hidden_states = jax.random.normal(k_hid, (B, block_size, hidden_size), jnp.float32)

    out = codet5_sub_forward(input_ids, hidden_states, block_size, validate_eos=True)
    jax.block_until_ready(out)

    # Reference check (plain numpy): last eos sits at position L-1 in each row.
    hs = np.asarray(hidden_states)
    ref = np.stack([hs[b, lengths[b] - 1, :] for b in range(B)])
    assert out.shape == (B, hidden_size)
    assert np.allclose(np.asarray(out), ref, atol=1e-6)

    print("KERNEL_OK")
</pallas_src>

<mosaic_0001>
module attributes {stable_mosaic.version = 11 : i64} {
  func.func @kernel(%arg0: i32, %arg1: memref<8xi32, #tpu.memory_space<smem>>, %arg2: memref<8xi32, #tpu.memory_space<smem>>, %arg3: memref<4x8x128xf32, #tpu.memory_space<any>>, %arg4: memref<8x128xf32, #tpu.memory_space<vmem>>, %arg5: memref<8x128xf32, #tpu.memory_space<vmem>>, %arg6: memref<8x!tpu.dma_semaphore, #tpu.memory_space<semaphore_mem>>) attributes {dimension_semantics = [#tpu.dimension_semantics<parallel>], iteration_bounds = array<i64: 1>, scalar_prefetch = 2 : i64, scratch_operands = 2 : i64, tpu.core_type = #tpu.core_type<tc>, window_params = [{}, {transform_indices = @transform_1, window_bounds = array<i64: 8, 128>}]} {
    %c8_i32 = arith.constant 8 : i32
    %0 = arith.muli %arg0, %c8_i32 : i32
    %c0_i32 = arith.constant 0 : i32
    %c8_i32_0 = arith.constant 8 : i32
    %1 = arith.addi %c0_i32, %c8_i32_0 : i32
    %c1_i32 = arith.constant 1 : i32
    scf.for %arg7 = %c0_i32 to %1 step %c1_i32  : i32 {
      %c1_i32_9 = arith.constant 1 : i32
      %5 = arith.muli %arg7, %c1_i32_9 : i32
      %c0_i32_10 = arith.constant 0 : i32
      %6 = arith.addi %c0_i32_10, %5 : i32
      %c7_i32 = arith.constant 7 : i32
      %7 = arith.andi %6, %c7_i32 : i32
      %c8_i32_11 = arith.constant 8 : i32
      %8 = arith.cmpi sge, %6, %c8_i32_11 : i32
      %9 = arith.extui %8 : i1 to i32
      %c0_i32_12 = arith.constant 0 : i32
      %10 = arith.cmpi ne, %9, %c0_i32_12 : i32
      scf.if %10 {
        %c8_i32_15 = arith.constant 8 : i32
        %22 = arith.subi %6, %c8_i32_15 : i32
        %23 = arith.addi %0, %22 : i32
        %24 = arith.index_cast %23 : i32 to index
        %25 = memref.load %arg1[%24] : memref<8xi32, #tpu.memory_space<smem>>
        %26 = arith.index_cast %23 : i32 to index
        %27 = memref.load %arg2[%26] : memref<8xi32, #tpu.memory_space<smem>>
        %c0_i32_16 = arith.constant 0 : i32
        %28 = tpu.memref_slice %arg3[%25, %27, %c0_i32_16] : memref<4x8x128xf32, #tpu.memory_space<any>> -> memref<1x1x128xf32, #tpu.memory_space<any>>
        %29 = tpu.memref_squeeze %28 : memref<1x1x128xf32, #tpu.memory_space<any>> -> memref<128xf32, #tpu.memory_space<any>>
        %c0_i32_17 = arith.constant 0 : i32
        %30 = tpu.memref_slice %arg5[%22, %c0_i32_17] : memref<8x128xf32, #tpu.memory_space<vmem>> -> memref<1x128xf32, #tpu.memory_space<vmem>>
        %31 = tpu.memref_squeeze %30 : memref<1x128xf32, #tpu.memory_space<vmem>> -> memref<128xf32, #tpu.memory_space<vmem>>
        %32 = tpu.memref_slice %arg6[%7] : memref<8x!tpu.dma_semaphore, #tpu.memory_space<semaphore_mem>> -> memref<1x!tpu.dma_semaphore, #tpu.memory_space<semaphore_mem>>
        %33 = tpu.memref_squeeze %32 : memref<1x!tpu.dma_semaphore, #tpu.memory_space<semaphore_mem>> -> memref<!tpu.dma_semaphore, #tpu.memory_space<semaphore_mem>>
        tpu.wait_dma2 semaphore(%33 : memref<!tpu.dma_semaphore, #tpu.memory_space<semaphore_mem>>) src(%29 : memref<128xf32, #tpu.memory_space<any>>) dst(%31 : memref<128xf32, #tpu.memory_space<vmem>>)
      } else {
      }
      %11 = arith.addi %0, %6 : i32
      %12 = arith.index_cast %11 : i32 to index
      %13 = memref.load %arg1[%12] : memref<8xi32, #tpu.memory_space<smem>>
      %14 = arith.index_cast %11 : i32 to index
      %15 = memref.load %arg2[%14] : memref<8xi32, #tpu.memory_space<smem>>
      %c0_i32_13 = arith.constant 0 : i32
      %16 = tpu.memref_slice %arg3[%13, %15, %c0_i32_13] : memref<4x8x128xf32, #tpu.memory_space<any>> -> memref<1x1x128xf32, #tpu.memory_space<any>>
      %17 = tpu.memref_squeeze %16 : memref<1x1x128xf32, #tpu.memory_space<any>> -> memref<128xf32, #tpu.memory_space<any>>
      %c0_i32_14 = arith.constant 0 : i32
      %18 = tpu.memref_slice %arg5[%6, %c0_i32_14] : memref<8x128xf32, #tpu.memory_space<vmem>> -> memref<1x128xf32, #tpu.memory_space<vmem>>
      %19 = tpu.memref_squeeze %18 : memref<1x128xf32, #tpu.memory_space<vmem>> -> memref<128xf32, #tpu.memory_space<vmem>>
      %20 = tpu.memref_slice %arg6[%7] : memref<8x!tpu.dma_semaphore, #tpu.memory_space<semaphore_mem>> -> memref<1x!tpu.dma_semaphore, #tpu.memory_space<semaphore_mem>>
      %21 = tpu.memref_squeeze %20 : memref<1x!tpu.dma_semaphore, #tpu.memory_space<semaphore_mem>> -> memref<!tpu.dma_semaphore, #tpu.memory_space<semaphore_mem>>
      tpu.enqueue_dma source(%17 : memref<128xf32, #tpu.memory_space<any>>) target(%19 : memref<128xf32, #tpu.memory_space<vmem>>) target_semaphore(%21 : memref<!tpu.dma_semaphore, #tpu.memory_space<semaphore_mem>>)
    }
    %c8_i32_1 = arith.constant 8 : i32
    %c0_i32_2 = arith.constant 0 : i32
    %c8_i32_3 = arith.constant 8 : i32
    %2 = arith.addi %c0_i32_2, %c8_i32_3 : i32
    %c1_i32_4 = arith.constant 1 : i32
    scf.for %arg7 = %c0_i32_2 to %2 step %c1_i32_4  : i32 {
      %c1_i32_9 = arith.constant 1 : i32
      %5 = arith.muli %arg7, %c1_i32_9 : i32
      %c0_i32_10 = arith.constant 0 : i32
      %6 = arith.addi %c0_i32_10, %5 : i32
      %c7_i32 = arith.constant 7 : i32
      %7 = arith.andi %6, %c7_i32 : i32
      %8 = arith.addi %0, %6 : i32
      %9 = arith.index_cast %8 : i32 to index
      %10 = memref.load %arg1[%9] : memref<8xi32, #tpu.memory_space<smem>>
      %11 = arith.index_cast %8 : i32 to index
      %12 = memref.load %arg2[%11] : memref<8xi32, #tpu.memory_space<smem>>
      %c0_i32_11 = arith.constant 0 : i32
      %13 = tpu.memref_slice %arg3[%10, %12, %c0_i32_11] : memref<4x8x128xf32, #tpu.memory_space<any>> -> memref<1x1x128xf32, #tpu.memory_space<any>>
      %14 = tpu.memref_squeeze %13 : memref<1x1x128xf32, #tpu.memory_space<any>> -> memref<128xf32, #tpu.memory_space<any>>
      %c0_i32_12 = arith.constant 0 : i32
      %15 = tpu.memref_slice %arg5[%6, %c0_i32_12] : memref<8x128xf32, #tpu.memory_space<vmem>> -> memref<1x128xf32, #tpu.memory_space<vmem>>
      %16 = tpu.memref_squeeze %15 : memref<1x128xf32, #tpu.memory_space<vmem>> -> memref<128xf32, #tpu.memory_space<vmem>>
      %17 = tpu.memref_slice %arg6[%7] : memref<8x!tpu.dma_semaphore, #tpu.memory_space<semaphore_mem>> -> memref<1x!tpu.dma_semaphore, #tpu.memory_space<semaphore_mem>>
      %18 = tpu.memref_squeeze %17 : memref<1x!tpu.dma_semaphore, #tpu.memory_space<semaphore_mem>> -> memref<!tpu.dma_semaphore, #tpu.memory_space<semaphore_mem>>
      tpu.wait_dma2 semaphore(%18 : memref<!tpu.dma_semaphore, #tpu.memory_space<semaphore_mem>>) src(%14 : memref<128xf32, #tpu.memory_space<any>>) dst(%16 : memref<128xf32, #tpu.memory_space<vmem>>)
    }
    %c8_i32_5 = arith.constant 8 : i32
    %c0 = arith.constant 0 : index
    %c0_6 = arith.constant 0 : index
    %3 = vector.load %arg5[%c0, %c0_6] : memref<8x128xf32, #tpu.memory_space<vmem>>, vector<8x128xf32>
    %c0_7 = arith.constant 0 : index
    %c0_8 = arith.constant 0 : index
    %4 = vector.load %arg4[%c0_7, %c0_8] : memref<8x128xf32, #tpu.memory_space<vmem>>, vector<8x128xf32>
    tpu.vector_store %arg4[%c0_7, %c0_8], %3 {strides = array<i32>} : memref<8x128xf32, #tpu.memory_space<vmem>>, vector<8x128xf32>,
    return
  }
  func.func @transform_1(%arg0: i32, %arg1: memref<8xi32, #tpu.memory_space<smem>>, %arg2: memref<8xi32, #tpu.memory_space<smem>>) -> (i32, i32) {
    %c0_i32 = arith.constant 0 : i32
    %c0_i32_0 = arith.constant 0 : i32
    return %arg0, %c0_i32 : i32, i32
  }
}

</mosaic_0001>

<llo_original>
// kernel: tpu_custom_call.1
$region0: #{tpu_custom_call.1}
  #allocation0 [shape = 'u32[]', space=smem, size = 0x4, offset = 0x4, fixed_abs, tag = 'smem constant byte address 0x4 - core index']
  #allocation1 [shape = 'u32[72,128]{1,0:T(1,128)}', space=vmem, size = 0x9000, scoped, tag = 'internal scratch']
  #allocation2 [shape = 'f32[8,128]{1,0:T(8,128)}', space=vmem, size = 0x1000, scoped, tag = 'scratch operand']
  #allocation3 [shape = 's32[8]{0}', space=sflag, size = 0x20, scoped, tag = 'scratch operand']
  #allocation4 [shape = 's32[1]{0}', space=sflag, size = 0x4, scoped, tag = 'scoped memory for tpu_custom_call.1']
  #allocation5 [shape = 'u8[512]{0}', space=smem, size = 0x200, scoped, tag = 'prefetched SMEM operand 0']
  #allocation6 [shape = 'u8[512]{0}', space=smem, size = 0x200, scoped, tag = 'prefetched SMEM operand 1']
  #allocation9 [shape = 's32[]', space=sflag, size = 0x4, offset = 0, fixed_abs, tag = 'sflag constant byte address 0x0 - dummy sync flag']
  #allocation10 [shape = 's32[]', space=sflag, size = 0x4, offset = 0, fixed_abs, tag = 'sflag constant byte address 0x0 - dummy sync flag']
  #allocation11 [shape = 'u32[]', space=smem, size = 0x4, offset = 0x44, fixed_abs, tag = 'smem constant byte address 0x44 - assertion arg 0']
  #allocation12 [shape = 'u32[]', space=smem, size = 0x4, offset = 0x48, fixed_abs, tag = 'smem constant byte address 0x48 - assertion arg 1']
  %s0 = inlined_call_operand.hbm [shape: s32[8], index: 0, kind: input, shape index: {}]
  %s1 = inlined_call_operand.hbm [shape: s32[8], index: 1, kind: input, shape index: {}]
  %s2 = inlined_call_operand.hbm [shape: f32[4,8,128], index: 2, kind: input, shape index: {}]
  %s3 = inlined_call_operand.hbm [shape: f32[8,128], index: 3, kind: output, shape index: {}]
  %s4 = sld [smem:[#allocation0]]
  $region32: #{tpu_custom_call.1} parent=0
    _
  %s6 = ssub.s32 1, %s4
  %s7 = scalar_select 0, %s6, %s4
  %s9 = sshll.u32 %s0, 4
  %s10 = int_to_ptr.hbm [resolvable:$true] %s9
  %12 = dma.hbm_to_smem %s10, 16, [#allocation5], [#allocation4]
  %s14 = sshll.u32 %s1, 4
  %s15 = int_to_ptr.hbm [resolvable:$true] %s14
  %17 = dma.hbm_to_smem %s15, 16, [#allocation6], [#allocation4]
  %19 = dma.done [#allocation4], 32
  %20 = sfence
  $region1: #{tpu_custom_call.1} parent=0
    #allocation7 [shape = 'u8[4096]{0}', space=vmem, size = 0x1000, scoped, tag = 'output window, operand 0, single buffered']
    #allocation8 [shape = 's32[1]{0}', space=sflag, size = 0x4, scoped, tag = 'scoped memory for tpu_custom_call.1']
    %21 = vsyncpa [#allocation8], 0
    %s22 = smul.u32 0, 8
    loop: start=0, step=1, limit=8
    $region2: #{tpu_custom_call.1} parent=1 // loop_pre_header
      _
    $region3: #{tpu_custom_call.1} parent=1 // loop_header
      %s24 = sphi 0, %s28
      %p25 = scmp.ge.s32.totalorder %s24, 8
    $region4: #{tpu_custom_call.1} parent=1 // loop_header_branch
      %27 = sbr.rel (%p25) target = $region8
    $region5: #{tpu_custom_call.1} parent=1 // loop_body
      %s29 = sand.u32 %s24, 7
      %p30 = scmp.ge.s32.totalorder %s24, 8
      // Predicated region
      $region9: #{tpu_custom_call.1} parent=5 // pred_check
        %p31 = pneg %p30
      $region10: #{tpu_custom_call.1} parent=5 // pred_check_branch
        %33 = sbr.rel (%p31) target = $region12
      $region11: #{tpu_custom_call.1} parent=5 // pred_region
        %s34 = ssub.s32 %s24, 8
        %s35 = sadd.s32 %s22, %s34
        %s36 = sld [smem:[#allocation5 + %s35]]
        %s37 = sld [smem:[#allocation6 + %s35]]
        %s38 = scalar_lea.sflag [#allocation3], %s29
        %40 = dma.done %s38, 16
      $region12: #{tpu_custom_call.1} parent=5 // pred_fallthru
        _
      %s41 = sadd.s32 %s22, %s24
      %s42 = sld [smem:[#allocation5 + %s41]]
      %s43 = sld [smem:[#allocation6 + %s41]]
      %s44 = smul.u32 %s42, 8
      %s45 = sadd.s32 %s43, %s44
      %s46 = scalar_lea.hbm %s2, %s45
      %s47 = scalar_lea.vmem [#allocation2], %s24
      %s48 = scalar_lea.sflag [#allocation3], %s29
      // Predicated region
      $region13: #{tpu_custom_call.1} parent=5 // pred_check
        _
      $region14: #{tpu_custom_call.1} parent=5 // pred_check_branch
        %50 = sbr.rel target = $region16
      $region15: #{tpu_custom_call.1} parent=5 // pred_region
        %51 = sst [smem:[#allocation11]] [#allocation10]
        %52 = sst [smem:[#allocation12]] [#allocation9]
      $region16: #{tpu_custom_call.1} parent=5 // pred_fallthru
        _
      %54 = shalt.err (0)
      %s56 = sshll.u32 %s46, 4
      %s57 = int_to_ptr.hbm [resolvable:$true] %s56
      %s58 = sshll.u32 %s47, 4
      %s59 = int_to_ptr.vmem [resolvable:$true] %s58
      %61 = dma.hbm_to_vmem [thread:$0]  %s57, 16, %s59, %s48
    $region6: #{tpu_custom_call.1} parent=1 // loop_footer
      %s28 = sadd.s32 1, %s24
    $region7: #{tpu_custom_call.1} parent=1 // loop_footer_branch
      %23 = sbr.rel target = $region3
    $region8: #{tpu_custom_call.1} parent=1 // loop_exit
      _
    loop: start=0, step=1, limit=8
    $region17: #{tpu_custom_call.1} parent=1 // loop_pre_header
      _
    $region18: #{tpu_custom_call.1} parent=1 // loop_header
      %s63 = sphi 0, %s67
      %p64 = scmp.ge.s32.totalorder %s63, 8
    $region19: #{tpu_custom_call.1} parent=1 // loop_header_branch
      %66 = sbr.rel (%p64) target = $region23
    $region20: #{tpu_custom_call.1} parent=1 // loop_body
      %s68 = sand.u32 %s63, 7
      %s69 = sadd.s32 %s22, %s63
      %s70 = sld [smem:[#allocation5 + %s69]]
      %s71 = sld [smem:[#allocation6 + %s69]]
      %s72 = scalar_lea.sflag [#allocation3], %s68
      %74 = dma.done %s72, 16
    $region21: #{tpu_custom_call.1} parent=1 // loop_footer
      %s67 = sadd.s32 1, %s63
    $region22: #{tpu_custom_call.1} parent=1 // loop_footer_branch
      %62 = sbr.rel target = $region18
    $region23: #{tpu_custom_call.1} parent=1 // loop_exit
      _
    %v75 = vld [vmem:[#allocation2] sm:$0xff]
    %76 = vst [vmem:[#allocation7] sm:$0xff] %v75
    // Predicated region
    $region24: #{tpu_custom_call.1} parent=1 // pred_check
      _
    $region25: #{tpu_custom_call.1} parent=1 // pred_check_branch
      %78 = sbr.rel (0) target = $region27
    $region26: #{tpu_custom_call.1} parent=1 // pred_region
      %80 = vsyncadd [#allocation8], 0
      %s82 = sshll.u32 [#allocation7], 4
      %s83 = int_to_ptr.vmem [resolvable:$true] %s82
      %s84 = sshll.u32 %s3, 4
      %s85 = int_to_ptr.hbm [resolvable:$true] %s84
      %87 = dma.vmem_to_hbm [thread:$0]  %s83, 128, %s85, [#allocation8]
    $region27: #{tpu_custom_call.1} parent=1 // pred_fallthru
      _
    // Predicated region
    $region28: #{tpu_custom_call.1} parent=1 // pred_check
      _
    $region29: #{tpu_custom_call.1} parent=1 // pred_check_branch
      %89 = sbr.rel (0) target = $region31
    $region30: #{tpu_custom_call.1} parent=1 // pred_region
      %91 = dma.done [#allocation8], 128
    $region31: #{tpu_custom_call.1} parent=1 // pred_fallthru
      _
    %92 = vsyncpa [#allocation8], 1
  %93 = vsyncmov [#allocation3]
  %s94 = vpop.sfrf %93
  %p95 = scmp.eq.s32.totalorder %s94, 0
  %p96 = pneg %p95
  %98 = shalt.err (%p96)
  %s99 = scalar_lea.sflag [#allocation3], 1
  %100 = vsyncmov %s99
  %s101 = vpop.sfrf %100
  %p102 = scmp.eq.s32.totalorder %s101, 0
  %p103 = pneg %p102
  %105 = shalt.err (%p103)
  %s106 = scalar_lea.sflag [#allocation3], 2
  %107 = vsyncmov %s106
  %s108 = vpop.sfrf %107
  %p109 = scmp.eq.s32.totalorder %s108, 0
  %p110 = pneg %p109
  %112 = shalt.err (%p110)
  %s113 = scalar_lea.sflag [#allocation3], 3
  %114 = vsyncmov %s113
  %s115 = vpop.sfrf %114
  %p116 = scmp.eq.s32.totalorder %s115, 0
  %p117 = pneg %p116
  %119 = shalt.err (%p117)
  %s120 = scalar_lea.sflag [#allocation3], 4
  %121 = vsyncmov %s120
  %s122 = vpop.sfrf %121
  %p123 = scmp.eq.s32.totalorder %s122, 0
  %p124 = pneg %p123
  %126 = shalt.err (%p124)
  %s127 = scalar_lea.sflag [#allocation3], 5
  %128 = vsyncmov %s127
  %s129 = vpop.sfrf %128
  %p130 = scmp.eq.s32.totalorder %s129, 0
  %p131 = pneg %p130
  %133 = shalt.err (%p131)
  %s134 = scalar_lea.sflag [#allocation3], 6
  %135 = vsyncmov %s134
  %s136 = vpop.sfrf %135
  %p137 = scmp.eq.s32.totalorder %s136, 0
  %p138 = pneg %p137
  %140 = shalt.err (%p138)
  %s141 = scalar_lea.sflag [#allocation3], 7
  %142 = vsyncmov %s141
  %s143 = vpop.sfrf %142
  %p144 = scmp.eq.s32.totalorder %s143, 0
  %p145 = pneg %p144
  %147 = shalt.err (%p145)

</llo_original>
